<compile_context>
chip_gen: v5e
topology: v5e:2x2
jax: 0.10.0
libtpu: 0.0.40
codegen_flags: <defaults>
</compile_context>

<pallas_src>
import functools

import jax
import jax.numpy as jnp
from jax.experimental import pallas as pl
from jax.experimental.pallas import tpu as pltpu

EPS_BN = 1e-3
EPS_ATTN = 1e-3
ROW_TILE_TARGET = 256   # rows per tile; fits comfortably in VMEM on v5e/v6e/v7x


# ----------------------------------------------------------------------------
# Small helpers for row tiling / padding
# ----------------------------------------------------------------------------
def _round_up(x, m):
    return (x + m - 1) // m * m


def _row_tile(n):
    return min(ROW_TILE_TARGET, _round_up(n, 8))


def _pad_rows(x, np_):
    n = x.shape[0]
    if n == np_:
        return x
    return jnp.pad(x, [(0, np_ - n)] + [(0, 0)] * (x.ndim - 1))


def _row_tiled_call(kernel, row_inputs, const_inputs, out_cols, out_dtype,
                    scratch_shapes=()):
    """Run `kernel` over row tiles; consts (weights/scales) stay resident."""
    n = row_inputs[0].shape[0]
    tile = _row_tile(n)
    np_ = _round_up(n, tile)
    args, in_specs = [], []
    for x in row_inputs:
        in_specs.append(pl.BlockSpec((tile, x.shape[1]), lambda i: (i, 0)))
        args.append(_pad_rows(x, np_))
    for x in const_inputs:
        assert x.ndim == 2
        in_specs.append(pl.BlockSpec(x.shape, lambda i: (0, 0)))
        args.append(x)
    out = pl.pallas_call(
        kernel,
        out_shape=jax.ShapeDtypeStruct((np_, out_cols), out_dtype),
        grid=(np_ // tile,),
        in_specs=in_specs,
        out_specs=pl.BlockSpec((tile, out_cols), lambda i: (i, 0)),
        scratch_shapes=list(scratch_shapes),
        compiler_params=pltpu.CompilerParams(
            dimension_semantics=("parallel",)),
    )(*args)
    return out[:n]


# ----------------------------------------------------------------------------
# Pallas kernels
# ----------------------------------------------------------------------------
def _bn_stats_kernel(x_ref, o_ref):
    # Accumulate per-channel sum / sum-of-squares over row tiles.
    @pl.when(pl.program_id(0) == 0)
    def _():
        o_ref[...] = jnp.zeros_like(o_ref)

    x = x_ref[...].astype(jnp.float32)
    s = jnp.sum(x, axis=0, keepdims=True)
    ss = jnp.sum(x * x, axis=0, keepdims=True)
    o_ref[...] += jnp.concatenate([s, ss], axis=0)


def bn_stats(x):
    n, c = x.shape
    tile = _row_tile(n)
    np_ = _round_up(n, tile)
    xp = _pad_rows(x, np_)                      # zero rows don't change sums
    return pl.pallas_call(
        _bn_stats_kernel,
        out_shape=jax.ShapeDtypeStruct((2, c), jnp.float32),
        grid=(np_ // tile,),
        in_specs=[pl.BlockSpec((tile, c), lambda i: (i, 0))],
        out_specs=pl.BlockSpec((2, c), lambda i: (0, 0)),
        compiler_params=pltpu.CompilerParams(
            dimension_semantics=("arbitrary",)),
    )(xp)


def bn_scale_shift(stats, gamma, beta, n):
    mean = stats[0] / n
    var = stats[1] / n - mean * mean
    rstd = jax.lax.rsqrt(var + EPS_BN)
    scale = gamma * rstd
    shift = beta - mean * scale
    return scale.reshape(1, -1), shift.reshape(1, -1)


def _affine_kernel(x_ref, sc_ref, sh_ref, o_ref):
    x = x_ref[...].astype(jnp.float32)
    o_ref[...] = (x * sc_ref[...] + sh_ref[...]).astype(o_ref.dtype)


def affine_apply(x, scale, shift):
    return _row_tiled_call(_affine_kernel, [x], [scale, shift],
                           x.shape[1], x.dtype)


def _affine_linear_kernel(x_ref, sc_ref, sh_ref, w_ref, b_ref, o_ref, *, relu):
    x = x_ref[...].astype(jnp.float32)
    h = x * sc_ref[...] + sh_ref[...]
    y = jnp.dot(h, w_ref[...], preferred_element_type=jnp.float32) + b_ref[...]
    if relu:
        y = jnp.maximum(y, 0.0)
    o_ref[...] = y.astype(o_ref.dtype)


def affine_linear(x, scale, shift, w, b=None, relu=False):
    c = x.shape[1]
    cout = w.shape[1]
    if b is None:
        b = jnp.zeros((cout,), jnp.float32)
    if scale is None:
        scale = jnp.ones((1, c), jnp.float32)
        shift = jnp.zeros((1, c), jnp.float32)
    return _row_tiled_call(
        functools.partial(_affine_linear_kernel, relu=relu),
        [x], [scale, shift, w, b.reshape(1, cout)], cout, x.dtype)


def _ffn_res_kernel(x_ref, sc_ref, sh_ref, w1_ref, b1_ref, w2_ref, b2_ref,
                    o_ref):
    # out = x + fc2(relu(fc1(BN2(x))))   -- BN affine fused as prologue.
    x = x_ref[...].astype(jnp.float32)
    h = x * sc_ref[...] + sh_ref[...]
    h = jnp.dot(h, w1_ref[...], preferred_element_type=jnp.float32) + b1_ref[...]
    h = jnp.maximum(h, 0.0)
    h = jnp.dot(h, w2_ref[...], preferred_element_type=jnp.float32) + b2_ref[...]
    o_ref[...] = (x + h).astype(o_ref.dtype)


def ffn_residual(x, scale, shift, w1, b1, w2, b2):
    return _row_tiled_call(
        _ffn_res_kernel, [x],
        [scale, shift, w1, b1.reshape(1, -1), w2, b2.reshape(1, -1)],
        x.shape[1], x.dtype)


def _conv_res_kernel(gk_ref, gh_ref, gw_ref, f_ref, wk_ref, wh_ref, ww_ref,
                     b_ref, o_ref, *, gd):
    # Three tap-collapsed GEMMs (K = taps*gd), bias, concat with identity
    # group, residual add with f: out = f + [conv_k, conv_h, conv_w, f_i].
    yk = jnp.dot(gk_ref[...], wk_ref[...], preferred_element_type=jnp.float32)
    yh = jnp.dot(gh_ref[...], wh_ref[...], preferred_element_type=jnp.float32)
    yw = jnp.dot(gw_ref[...], ww_ref[...], preferred_element_type=jnp.float32)
    conv = jnp.concatenate([yk, yh, yw], axis=-1) + b_ref[...]
    f = f_ref[...].astype(jnp.float32)
    out = jnp.concatenate([f[:, :3 * gd] + conv, f[:, 3 * gd:] * 2.0], axis=-1)
    o_ref[...] = out.astype(o_ref.dtype)


def conv_residual(gk, gh, gw, f, wk, wh, ww, bcat, gd):
    return _row_tiled_call(
        functools.partial(_conv_res_kernel, gd=gd),
        [gk, gh, gw, f], [wk, wh, ww, bcat], f.shape[1], f.dtype)


def _attn_kernel(wq_ref, wk_ref, q_ref, k_ref, v_ref, o_ref, acc_y, acc_z,
                 *, nhead, hd):
    j = pl.program_id(1)

    @pl.when(j == 0)
    def _():
        acc_y[...] = jnp.zeros_like(acc_y)
        acc_z[...] = jnp.zeros_like(acc_z)

    wq = wq_ref[...]                                       # (TQ, 1) int32
    wk = wk_ref[...]                                       # (1, TK) int32
    # Data is sorted by window id, so window-id ranges of non-overlapping
    # tiles cannot intersect -> skip the whole tile pair.
    overlap = jnp.logical_and(jnp.max(wq) >= jnp.min(wk),
                              jnp.min(wq) <= jnp.max(wk))

    @pl.when(overlap)
    def _():
        q = jnp.maximum(q_ref[...].astype(jnp.float32), 0.0)   # F.relu(q)
        k = jnp.maximum(k_ref[...].astype(jnp.float32), 0.0)   # F.relu(k)
        v = v_ref[...].astype(jnp.float32)
        mask = (wq == wk).astype(jnp.float32)                  # (TQ, TK)
        ys, zs = [], []
        for h in range(nhead):                                 # all heads/step
            sl = slice(h * hd, (h + 1) * hd)
            s = jax.lax.dot_general(q[:, sl], k[:, sl],
                                    (((1,), (1,)), ((), ())),
                                    preferred_element_type=jnp.float32) * mask
            ys.append(jnp.dot(s, v[:, sl],
                              preferred_element_type=jnp.float32))
            zs.append(jnp.broadcast_to(jnp.sum(s, axis=-1, keepdims=True),
                                       (s.shape[0], hd)))
        acc_y[...] += jnp.concatenate(ys, axis=-1)             # lane-dense
        acc_z[...] += jnp.concatenate(zs, axis=-1)

    @pl.when(j == pl.num_programs(1) - 1)
    def _():
        inv = pl.reciprocal(acc_z[...] + EPS_ATTN, approx=True)
        o_ref[...] = (acc_y[...] * inv).astype(o_ref.dtype)


def windowed_linear_attention(q, k, v, win_ids, nhead):
    n, c = q.shape
    hd = c // nhead
    tile = _row_tile(n)
    np_ = _round_up(n, tile)
    qp, kp, vp = (_pad_rows(t, np_) for t in (q, k, v))
    w = jnp.full((np_,), -1, jnp.int32).at[:n].set(win_ids.astype(jnp.int32))
    nt = np_ // tile
    out = pl.pallas_call(
        functools.partial(_attn_kernel, nhead=nhead, hd=hd),
        out_shape=jax.ShapeDtypeStruct((np_, c), q.dtype),
        grid=(nt, nt),
        in_specs=[
            pl.BlockSpec((tile, 1), lambda i, j: (i, 0)),
            pl.BlockSpec((1, tile), lambda i, j: (0, j)),
            pl.BlockSpec((tile, c), lambda i, j: (i, 0)),
            pl.BlockSpec((tile, c), lambda i, j: (j, 0)),
            pl.BlockSpec((tile, c), lambda i, j: (j, 0)),
        ],
        out_specs=pl.BlockSpec((tile, c), lambda i, j: (i, 0)),
        scratch_shapes=[pltpu.VMEM((tile, c), jnp.float32),
                        pltpu.VMEM((tile, c), jnp.float32)],
        compiler_params=pltpu.CompilerParams(
            dimension_semantics=("parallel", "arbitrary")),
    )(w.reshape(np_, 1), w.reshape(1, np_), qp, kp, vp)
    return out[:n]


# ----------------------------------------------------------------------------
# Sparse-conv neighbor tables + gather (XLA glue; index tables reused per layer)
# ----------------------------------------------------------------------------
def build_neighbor_tables(indices, grid_shape, offsets):
    b, d, h, w = grid_shape
    n = indices.shape[0]
    lut = jnp.full((b, d, h, w), -1, jnp.int32)
    lut = lut.at[indices[:, 0], indices[:, 1], indices[:, 2],
                 indices[:, 3]].set(jnp.arange(n, dtype=jnp.int32))
    dims = jnp.array([d, h, w], jnp.int32)
    tables = {}
    for name, offs in offsets.items():
        t = offs.shape[0]
        nb = indices[None, :, 1:4] + offs[:, None, :]            # [T, N, 3]
        inb = jnp.all((nb >= 0) & (nb < dims[None, None, :]), axis=-1)
        nbc = jnp.clip(nb, 0, dims[None, None, :] - 1)
        bidx = jnp.broadcast_to(indices[None, :, 0], (t, n))
        nbr = lut[bidx, nbc[..., 0], nbc[..., 1], nbc[..., 2]]
        tables[name] = jnp.where(inb, nbr, -1)                   # [T, N]
    return tables


# TODO(synk): the neighbor gather stays in XLA; an in-kernel scalar-prefetch
# DMA gather would avoid materializing the [N, T*Cin] tensor in HBM.
def gather_taps(f_group, nbr):
    t, n = nbr.shape
    gd = f_group.shape[1]
    g = jnp.where((nbr >= 0)[..., None], f_group[jnp.clip(nbr, 0), :], 0.0)
    return jnp.transpose(g, (1, 0, 2)).reshape(n, t * gd)        # [N, T*gd]


# ----------------------------------------------------------------------------
# SFLayer forward (JAX orchestration around the Pallas kernels)
# ----------------------------------------------------------------------------
def get_direction_attrs(indices, direction, win_size, grid_shape, shift=False):
    bcol = indices[:, 0].astype(jnp.int32)
    coord = indices[:, direction + 2].astype(jnp.int32)
    if shift:
        wc = (coord + win_size // 2) // win_size
    else:
        wc = coord // win_size
    mult = max(grid_shape[1:]) // win_size + 2       # collision-free multiplier
    key = bcol * mult + wc                           # lexicographic (batch, win)
    perm = jnp.argsort(key)                          # stable
    return key[perm].astype(jnp.int32), perm


def self_attn_branch(features, perm, win_sorted, p, nhead):
    n, c = features.shape
    stats = bn_stats(features)                       # stats are perm-invariant
    sc, sh = bn_scale_shift(stats, p["attn_norm_g"], p["attn_norm_b"], n)
    qkv = affine_linear(features[perm], sc, sh, p["qkv_w"])   # BN + qkv fused
    q, k, v = qkv[:, :c], qkv[:, c:2 * c], qkv[:, 2 * c:]
    y = windowed_linear_attention(q, k, v, win_sorted, nhead)  # [N, C]
    return affine_linear(y, None, None, p["proj_w"], p["proj_b"])


def cwi_ffn_3d(features, p, nbr_tables, gd):
    n, c = features.shape
    stats = bn_stats(features)
    sc, sh = bn_scale_shift(stats, p["bn_g"], p["bn_b"], n)
    f = affine_apply(features, sc, sh)               # materialized: gather src
    gk = gather_taps(f[:, :gd], nbr_tables["k"])
    gh = gather_taps(f[:, gd:2 * gd], nbr_tables["h"])
    gw = gather_taps(f[:, 2 * gd:3 * gd], nbr_tables["w"])
    wk = p["ck_w"].reshape(-1, gd)
    wh = p["ch_w"].reshape(-1, gd)
    ww = p["cw_w"].reshape(-1, gd)
    bcat = jnp.concatenate([p["ck_b"], p["ch_b"], p["cw_b"]]).reshape(1, 3 * gd)
    f2 = conv_residual(gk, gh, gw, f, wk, wh, ww, bcat, gd)   # f + src2
    stats2 = bn_stats(f2)
    sc2, sh2 = bn_scale_shift(stats2, p["bn2_g"], p["bn2_b"], n)
    return ffn_residual(f2, sc2, sh2, p["fc1_w"], p["fc1_b"],
                        p["fc2_w"], p["fc2_b"])


def sf_layer_forward(features, indices, params, *, nhead, directions, win_size,
                     grid_shape, shift=False):
    conv_size = win_size + 1
    pad = conv_size // 2
    offs = {
        "k": jnp.array([(dz, dy, dx) for dz in (-1, 0, 1) for dy in (-1, 0, 1)
                        for dx in (-1, 0, 1)], jnp.int32),
        "h": jnp.array([(0, 0, kx - pad) for kx in range(conv_size)], jnp.int32),
        "w": jnp.array([(0, ky - pad, 0) for ky in range(conv_size)], jnp.int32),
    }
    nbr_tables = build_neighbor_tables(indices, grid_shape, offs)  # reused
    gd = features.shape[1] // 4
    for i in range(directions):
        p = params[i]
        win_sorted, perm = get_direction_attrs(indices, i, win_size,
                                               grid_shape, shift)
        y = self_attn_branch(features, perm, win_sorted, p, nhead)
        features = features.at[perm].add(y)          # == features + inv_x
        features = cwi_ffn_3d(features, p["ffn"], nbr_tables, gd)
    return features


# ----------------------------------------------------------------------------
# Deterministic parameter init (synthetic; shapes from the module __init__)
# ----------------------------------------------------------------------------
def make_sf_params(key, embed_dim, nhead, directions, win_size):
    del nhead
    gd = embed_dim // 4
    conv_size = win_size + 1
    params = []
    for i in range(directions):
        kd = jax.random.fold_in(key, i)
        ks = jax.random.split(kd, 13)
        nrm = lambda kk, shape, s=0.1: s * jax.random.normal(kk, shape, jnp.float32)
        params.append(dict(
            attn_norm_g=jnp.ones((embed_dim,), jnp.float32),
            attn_norm_b=jnp.zeros((embed_dim,), jnp.float32),
            qkv_w=nrm(ks[0], (embed_dim, 3 * embed_dim)),
            proj_w=nrm(ks[1], (embed_dim, embed_dim)),
            proj_b=nrm(ks[2], (embed_dim,), 0.01),
            ffn=dict(
                bn_g=jnp.ones((embed_dim,), jnp.float32),
                bn_b=jnp.zeros((embed_dim,), jnp.float32),
                ck_w=nrm(ks[3], (27, gd, gd)),
                ck_b=nrm(ks[4], (gd,), 0.01),
                ch_w=nrm(ks[5], (conv_size, gd, gd)),
                ch_b=nrm(ks[6], (gd,), 0.01),
                cw_w=nrm(ks[7], (conv_size, gd, gd)),
                cw_b=nrm(ks[8], (gd,), 0.01),
                bn2_g=jnp.ones((embed_dim,), jnp.float32),
                bn2_b=jnp.zeros((embed_dim,), jnp.float32),
                fc1_w=nrm(ks[9], (embed_dim, 2 * embed_dim)),
                fc1_b=nrm(ks[10], (2 * embed_dim,), 0.01),
                fc2_w=nrm(ks[11], (2 * embed_dim, embed_dim)),
                fc2_b=nrm(ks[12], (embed_dim,), 0.01),
            ),
        ))
    return params


# ----------------------------------------------------------------------------
if __name__ == "__main__":
    key = jax.random.PRNGKey(0)
    B, D, H, W = 2, 2, 16, 16           # voxel grid (batch, z, y, x)
    embed_dim, nhead, directions, win_size = 32, 4, 2, 4
    n_per_batch = 32

    kcoord0, kcoord1, kfeat, kparam = jax.random.split(key, 4)
    idx_list = []
    for b, kk in enumerate([kcoord0, kcoord1]):
        flat = jax.random.permutation(kk, D * H * W)[:n_per_batch]
        z = (flat // (H * W)).astype(jnp.int32)
        y = ((flat // W) % H).astype(jnp.int32)
        x = (flat % W).astype(jnp.int32)
        bcol = jnp.full((n_per_batch,), b, jnp.int32)
        idx_list.append(jnp.stack([bcol, z, y, x], axis=1))
    indices = jnp.concatenate(idx_list, axis=0)          # [N, 4] int32
    N = indices.shape[0]

    features = 0.1 * jax.random.normal(kfeat, (N, embed_dim), jnp.float32)
    params = make_sf_params(kparam, embed_dim, nhead, directions, win_size)

    out = sf_layer_forward(features, indices, params, nhead=nhead,
                           directions=directions, win_size=win_size,
                           grid_shape=(B, D, H, W), shift=False)
    out = jax.block_until_ready(out)
    assert out.shape == (N, embed_dim), out.shape
    assert bool(jnp.all(jnp.isfinite(out)))
    print("KERNEL_OK")
</pallas_src>

<mosaic_0001>
module attributes {stable_mosaic.version = 11 : i64} {
  func.func @_bn_stats_kernel(%arg0: i32, %arg1: memref<64x32xf32, #tpu.memory_space<vmem>>, %arg2: memref<2x32xf32, #tpu.memory_space<vmem>>) attributes {dimension_semantics = [#tpu.dimension_semantics<arbitrary>], iteration_bounds = array<i64: 1>, scalar_prefetch = 0 : i64, scratch_operands = 0 : i64, tpu.core_type = #tpu.core_type<tc>, window_params = [{transform_indices = @transform_0, window_bounds = array<i64: 64, 32>}, {pipeline_mode = #tpu.pipeline_mode<synchronous>, transform_indices = @transform_1, window_bounds = array<i64: 2, 32>}]} {
    %c0_i32 = arith.constant 0 : i32
    %0 = arith.cmpi eq, %arg0, %c0_i32 : i32
    %1 = arith.extui %0 : i1 to i32
    %c0_i32_0 = arith.constant 0 : i32
    %2 = arith.cmpi ne, %1, %c0_i32_0 : i32
    scf.if %2 {
      %cst_7 = arith.constant 0.000000e+00 : f32
      %13 = vector.broadcast %cst_7 : f32 to vector<2x32xf32>
      %c0_8 = arith.constant 0 : index
      %c0_9 = arith.constant 0 : index
      %14 = vector.load %arg2[%c0_8, %c0_9] : memref<2x32xf32, #tpu.memory_space<vmem>>, vector<2x32xf32>
      tpu.vector_store %arg2[%c0_8, %c0_9], %13 {strides = array<i32>} : memref<2x32xf32, #tpu.memory_space<vmem>>, vector<2x32xf32>,
    } else {
    }
    %c0 = arith.constant 0 : index
    %c0_1 = arith.constant 0 : index
    %3 = vector.load %arg1[%c0, %c0_1] : memref<64x32xf32, #tpu.memory_space<vmem>>, vector<64x32xf32>
    %cst = arith.constant dense<0.000000e+00> : vector<32xf32>
    %4 = vector.multi_reduction <add>, %3, %cst [0] : vector<64x32xf32> to vector<32xf32>
    %5 = vector.shape_cast %4 : vector<32xf32> to vector<1x32xf32>
    %6 = arith.mulf %3, %3 : vector<64x32xf32>
    %cst_2 = arith.constant dense<0.000000e+00> : vector<32xf32>
    %7 = vector.multi_reduction <add>, %6, %cst_2 [0] : vector<64x32xf32> to vector<32xf32>
    %8 = vector.shape_cast %7 : vector<32xf32> to vector<1x32xf32>
    %c0_3 = arith.constant 0 : index
    %c0_4 = arith.constant 0 : index
    %9 = vector.load %arg2[%c0_3, %c0_4] : memref<2x32xf32, #tpu.memory_space<vmem>>, vector<2x32xf32>
    %10 = tpu.concatenate %5, %8 in 0 : vector<1x32xf32>, vector<1x32xf32> -> vector<2x32xf32>
    %11 = arith.addf %9, %10 : vector<2x32xf32>
    %c0_5 = arith.constant 0 : index
    %c0_6 = arith.constant 0 : index
    %12 = vector.load %arg2[%c0_5, %c0_6] : memref<2x32xf32, #tpu.memory_space<vmem>>, vector<2x32xf32>
    tpu.vector_store %arg2[%c0_5, %c0_6], %11 {strides = array<i32>} : memref<2x32xf32, #tpu.memory_space<vmem>>, vector<2x32xf32>,
    return
  }
  func.func @transform_0(%arg0: i32) -> (i32, i32) {
    %c0_i32 = arith.constant 0 : i32
    %c0_i32_0 = arith.constant 0 : i32
    return %arg0, %c0_i32 : i32, i32
  }
  func.func @transform_1(%arg0: i32) -> (i32, i32) {
    %c0_i32 = arith.constant 0 : i32
    %c0_i32_0 = arith.constant 0 : i32
    %c0_i32_1 = arith.constant 0 : i32
    return %c0_i32, %c0_i32_0 : i32, i32
  }
}

</mosaic_0001>

<llo_original>
// kernel: tpu_custom_call.1
$region0: #{tpu_custom_call.1}
  #allocation0 [shape = 'u32[]', space=smem, size = 0x4, offset = 0x4, fixed_abs, tag = 'smem constant byte address 0x4 - core index']
  #allocation1 [shape = 'u32[72,128]{1,0:T(1,128)}', space=vmem, size = 0x9000, scoped, tag = 'internal scratch']
  %s0 = inlined_call_operand.vmem [shape: f32[64,32], index: 0, kind: input, shape index: {}]
  %s1 = inlined_call_operand.hbm [shape: f32[2,32], index: 1, kind: output, shape index: {}]
  %s2 = sld [smem:[#allocation0]]
  $region18: #{tpu_custom_call.1} parent=0
    _
  %s4 = ssub.s32 1, %s2
  %s5 = scalar_select 0, %s4, %s2
  $region1: #{tpu_custom_call.1} parent=0
    #allocation2 [shape = 'u8[1024]{0}', space=vmem, size = 0x400, scoped, tag = 'output window, operand 0, single buffered']
    #allocation3 [shape = 's32[1]{0}', space=sflag, size = 0x4, scoped, tag = 'scoped memory for tpu_custom_call.1']
    %6 = vsyncpa [#allocation3], 0
    // Predicated region
    $region2: #{tpu_custom_call.1} parent=1 // pred_check
      _
    $region3: #{tpu_custom_call.1} parent=1 // pred_check_branch
      %8 = sbr.rel (0) target = $region5
    $region4: #{tpu_custom_call.1} parent=1 // pred_region
      _
    $region5: #{tpu_custom_call.1} parent=1 // pred_fallthru
      _
    %p9 = scmp.eq.s32.totalorder 0, 0
    // Predicated region
    $region6: #{tpu_custom_call.1} parent=1 // pred_check
      %p10 = pneg %p9
    $region7: #{tpu_custom_call.1} parent=1 // pred_check_branch
      %12 = sbr.rel (%p10) target = $region9
    $region8: #{tpu_custom_call.1} parent=1 // pred_region
      %vm13 = vcmask 254976
      %14 = vst.msk [vmem:[#allocation2] sm:$0x3] %vm13, 0.0
    $region9: #{tpu_custom_call.1} parent=1 // pred_fallthru
      _
    %v15 = vld [vmem:[%s0] sm:$0xff]
    %v16 = vld [vmem:[%s0 + $0x8] sm:$0xff]
    %v17 = vld [vmem:[%s0 + $0x10] sm:$0xff]
    %v18 = vld [vmem:[%s0 + $0x18] sm:$0xff]
    %v19 = vld [vmem:[%s0 + $0x20] sm:$0xff]
    %v20 = vld [vmem:[%s0 + $0x28] sm:$0xff]
    %v21 = vld [vmem:[%s0 + $0x30] sm:$0xff]
    %v22 = vld [vmem:[%s0 + $0x38] sm:$0xff]
    %vm23 = vcmask 261120
    %v24 = vsel %vm23, %v15, 0.0
    %v25 = vsel %vm23, %v16, 0.0
    %v26 = vadd.f32 %v24, %v25
    %v27 = vsel %vm23, %v17, 0.0
    %v28 = vadd.f32 %v26, %v27
    %v29 = vsel %vm23, %v18, 0.0
    %v30 = vadd.f32 %v28, %v29
    %v31 = vsel %vm23, %v19, 0.0
    %v32 = vadd.f32 %v30, %v31
    %v33 = vsel %vm23, %v20, 0.0
    %v34 = vadd.f32 %v32, %v33
    %v35 = vsel %vm23, %v21, 0.0
    %v36 = vadd.f32 %v34, %v35
    %v37 = vsel %vm23, %v22, 0.0
    %v38 = vadd.f32 %v36, %v37
    %v39 = vrot.slane %v38, 4
    %v40 = vadd.f32 %v38, %v39
    %v41 = vrot.slane %v40, 2
    %v42 = vadd.f32 %v40, %v41
    %v43 = vrot.slane %v42, 1
    %v44 = vadd.f32 %v42, %v43
    %v45 = vmul.f32 %v15, %v15
    %v46 = vmul.f32 %v16, %v16
    %v47 = vmul.f32 %v17, %v17
    %v48 = vmul.f32 %v18, %v18
    %v49 = vmul.f32 %v19, %v19
    %v50 = vmul.f32 %v20, %v20
    %v51 = vmul.f32 %v21, %v21
    %v52 = vmul.f32 %v22, %v22
    %v53 = vsel %vm23, %v45, 0.0
    %v54 = vsel %vm23, %v46, 0.0
    %v55 = vadd.f32 %v53, %v54
    %v56 = vsel %vm23, %v47, 0.0
    %v57 = vadd.f32 %v55, %v56
    %v58 = vsel %vm23, %v48, 0.0
    %v59 = vadd.f32 %v57, %v58
    %v60 = vsel %vm23, %v49, 0.0
    %v61 = vadd.f32 %v59, %v60
    %v62 = vsel %vm23, %v50, 0.0
    %v63 = vadd.f32 %v61, %v62
    %v64 = vsel %vm23, %v51, 0.0
    %v65 = vadd.f32 %v63, %v64
    %v66 = vsel %vm23, %v52, 0.0
    %v67 = vadd.f32 %v65, %v66
    %v68 = vrot.slane %v67, 4
    %v69 = vadd.f32 %v67, %v68
    %v70 = vrot.slane %v69, 2
    %v71 = vadd.f32 %v69, %v70
    %v72 = vrot.slane %v71, 1
    %v73 = vadd.f32 %v71, %v72
    %v74 = vld [vmem:[#allocation2] sm:$0x3]
    %vm75 = vcmask 1040384
    %v76 = vsel %vm75, %v44, %v73
    %v77 = vadd.f32 %v74, %v76
    %vm78 = vcmask 254976
    %79 = vst.msk [vmem:[#allocation2] sm:$0x3] %vm78, %v77
    // Predicated region
    $region10: #{tpu_custom_call.1} parent=1 // pred_check
      _
    $region11: #{tpu_custom_call.1} parent=1 // pred_check_branch
      %81 = sbr.rel (0) target = $region13
    $region12: #{tpu_custom_call.1} parent=1 // pred_region
      %83 = vsyncadd [#allocation3], 0
      %s85 = sshll.u32 [#allocation2], 4
      %s86 = int_to_ptr.vmem [resolvable:$true] %s85
      %s87 = sshll.u32 %s1, 4
      %s88 = int_to_ptr.hbm [resolvable:$true] %s87
      %90 = dma.vmem_to_hbm [thread:$0]  %s86, 32, %s88, [#allocation3]
    $region13: #{tpu_custom_call.1} parent=1 // pred_fallthru
      _
    // Predicated region
    $region14: #{tpu_custom_call.1} parent=1 // pred_check
      _
    $region15: #{tpu_custom_call.1} parent=1 // pred_check_branch
      %92 = sbr.rel (0) target = $region17
    $region16: #{tpu_custom_call.1} parent=1 // pred_region
      %94 = dma.done [#allocation3], 32
    $region17: #{tpu_custom_call.1} parent=1 // pred_fallthru
      _
    %95 = vsyncpa [#allocation3], 1

</llo_original>
